<compile_context>
chip_gen: v7x
topology: tpu7x:2x2x1
jax: 0.10.0
libtpu: 0.0.40
codegen_flags: <defaults>
</compile_context>

<pallas_src>
import jax
import jax.numpy as jnp
from jax.experimental import pallas as pl
from jax.experimental.pallas import tpu as pltpu

_LANE_CHOICES = (1024, 512, 256, 128)  # lane-dense widths (multiples of 128)
_TILE_BYTES = 8 << 20                  # ~8 MiB per block (amortizes ~0.35us/step)
_VMEM_LIMIT = 48 << 20                 # 2x in + 2x out buffers + f32 noise temp (<64 MiB v7x)
_TAIL_STREAM_BASE = 0x40000000         # distinct PRNG stream base for the tail call


def _add_noise_tpu_kernel(seed_ref, x_ref, o_ref):
    # Seed the HW PRNG with the (user seed, stream base + tile id) pair: the PRNG
    # hashes the words, so different seeds / calls / tiles never share a stream.
    pltpu.prng_seed(seed_ref[0], seed_ref[1] + pl.program_id(0))
    noise = pltpu.stateful_normal(x_ref.shape, jnp.float32)
    # TODO(synk): if a v7x bundle dump shows the single EUP slot binding (Box-Muller
    # transcendentals in stateful_normal), switch to a VPU-only inverse-CDF/CLT
    # generator on pltpu.prng_random_bits; on v5e/v6e it is free filler under the
    # HBM-bound add.
    o_ref[...] = (x_ref[...].astype(jnp.float32) + noise).astype(o_ref.dtype)


def _add_noise_fallback_kernel(x_ref, n_ref, o_ref):
    o_ref[...] = (x_ref[...].astype(jnp.float32) + n_ref[...]).astype(o_ref.dtype)


def _noise_add_2d(x2d, seed, stream_base, donate_x=False):
    """Add i.i.d. N(0,1) noise to a 2D (rows, lanes) slab via Pallas."""
    rows, lanes = x2d.shape
    dtype = x2d.dtype

    # Tile selection: whole slab for tiny inputs; otherwise sublane-aligned tiles
    # (multiple of 8 rows) capped at ~8 MiB, with >= 2 grid steps when possible so
    # the "parallel" axis shards across both v7x TensorCores.
    bytes_per_row = lanes * jnp.dtype(dtype).itemsize
    max_rows = max(8, (_TILE_BYTES // bytes_per_row) // 8 * 8)
    if rows <= 8:
        tile_r = rows
    else:
        half = ((rows + 1) // 2 + 7) // 8 * 8
        tile_r = min(max_rows, half)
    grid = (pl.cdiv(rows, tile_r),)
    block = (tile_r, lanes)
    cparams = pltpu.CompilerParams(
        dimension_semantics=("parallel",),
        vmem_limit_bytes=_VMEM_LIMIT,
    )

    if jax.default_backend() == "tpu":
        seeds = jnp.asarray([seed, stream_base], dtype=jnp.int32)
        kwargs = {}
        if donate_x:
            # x2d is call-arg index 1 (after the prefetched seeds); output 0 aliases it.
            kwargs["input_output_aliases"] = {1: 0}
        return pl.pallas_call(
            _add_noise_tpu_kernel,
            out_shape=jax.ShapeDtypeStruct((rows, lanes), dtype),
            grid_spec=pltpu.PrefetchScalarGridSpec(
                num_scalar_prefetch=1,
                grid=grid,
                in_specs=[pl.BlockSpec(block, lambda i, s: (i, 0))],
                out_specs=pl.BlockSpec(block, lambda i, s: (i, 0)),
            ),
            compiler_params=cparams,
            **kwargs,
        )(seeds, x2d)

    # TODO(synk): pltpu.prng_seed / pltpu.stateful_normal have no off-TPU lowering;
    # off-TPU the noise comes from jax.random and only the add runs in Pallas.
    key = jax.random.fold_in(jax.random.PRNGKey(seed), stream_base)
    noise2d = jax.random.normal(key, (rows, lanes), dtype=jnp.float32)
    return pl.pallas_call(
        _add_noise_fallback_kernel,
        out_shape=jax.ShapeDtypeStruct((rows, lanes), dtype),
        grid=grid,
        in_specs=[pl.BlockSpec(block, lambda i: (i, 0)),
                  pl.BlockSpec(block, lambda i: (i, 0))],
        out_specs=pl.BlockSpec(block, lambda i: (i, 0)),
        compiler_params=cparams,
    )(x2d, noise2d)


def sampling(x: jax.Array, seed: int = 0, donate_x: bool = False) -> jax.Array:
    """FedSage Sampling.forward: x + N(0, 1) noise, same shape/dtype as x."""
    orig_shape = x.shape
    n = x.size
    if n == 0:
        return x
    flat = x.reshape(-1)

    # Widest lane width that divides n -> copy-free reshape, unmasked vst.
    lane_w = next((w for w in _LANE_CHOICES if n >= w and n % w == 0), None)
    if lane_w is not None:
        out2d = _noise_add_2d(flat.reshape(n // lane_w, lane_w), seed, 0, donate_x)
        return out2d.reshape(orig_shape)

    # Ragged size: run the 128-aligned bulk through the main kernel and only the
    # <128-element tail through a tiny second call (no whole-array pad/slice).
    n_bulk = (n // 128) * 128
    tail = n - n_bulk
    pieces = []
    if n_bulk:
        bulk_out = _noise_add_2d(flat[:n_bulk].reshape(n_bulk // 128, 128), seed, 0)
        pieces.append(bulk_out.reshape(-1))
    if tail:
        tail_out = _noise_add_2d(flat[n_bulk:].reshape(1, tail), seed, _TAIL_STREAM_BASE)
        pieces.append(tail_out.reshape(-1))
    if len(pieces) == 1:
        return pieces[0].reshape(orig_shape)
    return jnp.concatenate(pieces).reshape(orig_shape)


if __name__ == "__main__":
    key = jax.random.PRNGKey(0)
    # Small NCHW-shaped input consistent with a conv-style tensor.
    x = jax.random.normal(key, (2, 4, 16, 16), dtype=jnp.float32)

    out = jax.block_until_ready(sampling(x, seed=0))

    # Sanity checks: shape/dtype preserved, noise actually added, noise ~ N(0, 1).
    assert out.shape == x.shape
    assert out.dtype == x.dtype
    noise = out - x
    assert bool(jnp.any(noise != 0.0))
    assert abs(float(jnp.mean(noise))) < 0.5
    assert 0.3 < float(jnp.std(noise)) < 2.0

    print("KERNEL_OK")
</pallas_src>

<mosaic_0001>
module attributes {stable_mosaic.version = 11 : i64} {
  func.func @_add_noise_fallback_kernel(%arg0: i32, %arg1: memref<2x1024xf32, #tpu.memory_space<vmem>>, %arg2: memref<2x1024xf32, #tpu.memory_space<vmem>>, %arg3: memref<2x1024xf32, #tpu.memory_space<vmem>>) attributes {dimension_semantics = [#tpu.dimension_semantics<parallel>], iteration_bounds = array<i64: 1>, scalar_prefetch = 0 : i64, scratch_operands = 0 : i64, tpu.core_type = #tpu.core_type<tc>, window_params = [{transform_indices = @transform_0, window_bounds = array<i64: 2, 1024>}, {transform_indices = @transform_1, window_bounds = array<i64: 2, 1024>}, {transform_indices = @transform_2, window_bounds = array<i64: 2, 1024>}]} {
    %c0 = arith.constant 0 : index
    %c0_0 = arith.constant 0 : index
    %0 = vector.load %arg1[%c0, %c0_0] : memref<2x1024xf32, #tpu.memory_space<vmem>>, vector<2x1024xf32>
    %c0_1 = arith.constant 0 : index
    %c0_2 = arith.constant 0 : index
    %1 = vector.load %arg2[%c0_1, %c0_2] : memref<2x1024xf32, #tpu.memory_space<vmem>>, vector<2x1024xf32>
    %2 = arith.addf %0, %1 : vector<2x1024xf32>
    %c0_3 = arith.constant 0 : index
    %c0_4 = arith.constant 0 : index
    %3 = vector.load %arg3[%c0_3, %c0_4] : memref<2x1024xf32, #tpu.memory_space<vmem>>, vector<2x1024xf32>
    tpu.vector_store %arg3[%c0_3, %c0_4], %2 {strides = array<i32>} : memref<2x1024xf32, #tpu.memory_space<vmem>>, vector<2x1024xf32>,
    return
  }
  func.func @transform_0(%arg0: i32) -> (i32, i32) {
    %c0_i32 = arith.constant 0 : i32
    %c0_i32_0 = arith.constant 0 : i32
    return %arg0, %c0_i32 : i32, i32
  }
  func.func @transform_1(%arg0: i32) -> (i32, i32) {
    %c0_i32 = arith.constant 0 : i32
    %c0_i32_0 = arith.constant 0 : i32
    return %arg0, %c0_i32 : i32, i32
  }
  func.func @transform_2(%arg0: i32) -> (i32, i32) {
    %c0_i32 = arith.constant 0 : i32
    %c0_i32_0 = arith.constant 0 : i32
    return %arg0, %c0_i32 : i32, i32
  }
}

</mosaic_0001>

<llo_original>
// kernel: tpu_custom_call.1
$region0: #{tpu_custom_call.1}
  #allocation0 [shape = 'u32[]', space=smem, size = 0x4, offset = 0x4, fixed_abs, tag = 'smem constant byte address 0x4 - core index']
  #allocation1 [shape = 'u32[144,128]{1,0:T(1,128)}', space=vmem, size = 0x12000, scoped, tag = 'internal scratch']
  %s0 = inlined_call_operand.hbm [shape: f32[2,1024], index: 0, kind: input, shape index: {}]
  %s1 = inlined_call_operand.hbm [shape: f32[2,1024], index: 1, kind: input, shape index: {}]
  %s2 = inlined_call_operand.hbm [shape: f32[2,1024], index: 2, kind: output, shape index: {}]
  %s3 = sld [smem:[#allocation0]]
  $region26: #{tpu_custom_call.1} parent=0
    _
  %s5 = ssub.s32 1, %s3
  %s6 = scalar_select 0, %s5, %s3
  $region1: #{tpu_custom_call.1} parent=0
    #allocation2 [shape = 'u8[8192]{0}', space=vmem, size = 0x2000, scoped, tag = 'input window, operand 0, single buffered']
    #allocation3 [shape = 's32[1]{0}', space=sflag, size = 0x4, scoped, tag = 'scoped memory for tpu_custom_call.1']
    #allocation4 [shape = 's32[1]{0}', space=sflag, size = 0x4, scoped, tag = 'scoped memory for tpu_custom_call.1']
    #allocation5 [shape = 'u8[8192]{0}', space=vmem, size = 0x2000, scoped, tag = 'input window, operand 1, single buffered']
    #allocation6 [shape = 's32[1]{0}', space=sflag, size = 0x4, scoped, tag = 'scoped memory for tpu_custom_call.1']
    #allocation7 [shape = 'u8[8192]{0}', space=vmem, size = 0x2000, scoped, tag = 'output window, operand 0, single buffered']
    %7 = vsyncpa [#allocation3], 0
    %8 = vsyncpa [#allocation6], 0
    %9 = vsyncpa [#allocation4], 0
    // Predicated region
    $region2: #{tpu_custom_call.1} parent=1 // pred_check
      _
    $region3: #{tpu_custom_call.1} parent=1 // pred_check_branch
      %11 = sbr.rel (0) target = $region5
    $region4: #{tpu_custom_call.1} parent=1 // pred_region
      %s13 = ssub.s32 256, 256
      %14 = vsyncadd [#allocation3], %s13
      %s16 = sshll.u32 [#allocation2], 4
      %s17 = int_to_ptr.vmem [resolvable:$true] %s16
      %19 = dma.hbm_to_vmem [thread:$0]  %s0, 256, %s17, [#allocation3]
    $region5: #{tpu_custom_call.1} parent=1 // pred_fallthru
      _
    // Predicated region
    $region6: #{tpu_custom_call.1} parent=1 // pred_check
      _
    $region7: #{tpu_custom_call.1} parent=1 // pred_check_branch
      %21 = sbr.rel (0) target = $region9
    $region8: #{tpu_custom_call.1} parent=1 // pred_region
      %s23 = ssub.s32 256, 256
      %24 = vsyncadd [#allocation6], %s23
      %s26 = sshll.u32 [#allocation5], 4
      %s27 = int_to_ptr.vmem [resolvable:$true] %s26
      %29 = dma.hbm_to_vmem [thread:$0]  %s1, 256, %s27, [#allocation6]
    $region9: #{tpu_custom_call.1} parent=1 // pred_fallthru
      _
    // Predicated region
    $region10: #{tpu_custom_call.1} parent=1 // pred_check
      _
    $region11: #{tpu_custom_call.1} parent=1 // pred_check_branch
      %31 = sbr.rel (0) target = $region13
    $region12: #{tpu_custom_call.1} parent=1 // pred_region
      %32 = dma.done [#allocation3], 256
    $region13: #{tpu_custom_call.1} parent=1 // pred_fallthru
      _
    // Predicated region
    $region14: #{tpu_custom_call.1} parent=1 // pred_check
      _
    $region15: #{tpu_custom_call.1} parent=1 // pred_check_branch
      %34 = sbr.rel (0) target = $region17
    $region16: #{tpu_custom_call.1} parent=1 // pred_region
      %35 = dma.done [#allocation6], 256
    $region17: #{tpu_custom_call.1} parent=1 // pred_fallthru
      _
    %v36 = vld [vmem:[#allocation2] sm:$0xff]
    %v37 = vld [vmem:[#allocation2 + $0x8] sm:$0xff]
    %v38 = vld [vmem:[#allocation5] sm:$0xff]
    %v39 = vld [vmem:[#allocation5 + $0x8] sm:$0xff]
    %v40 = vadd.f32 %v36, %v38
    %v41 = vadd.f32 %v37, %v39
    %42 = vst [vmem:[#allocation7] sm:$0xff] %v40
    %43 = vst [vmem:[#allocation7 + $0x8] sm:$0xff] %v41
    // Predicated region
    $region18: #{tpu_custom_call.1} parent=1 // pred_check
      _
    $region19: #{tpu_custom_call.1} parent=1 // pred_check_branch
      %45 = sbr.rel (0) target = $region21
    $region20: #{tpu_custom_call.1} parent=1 // pred_region
      %s47 = ssub.s32 256, 256
      %48 = vsyncadd [#allocation4], %s47
      %s50 = sshll.u32 [#allocation7], 4
      %s51 = int_to_ptr.vmem [resolvable:$true] %s50
      %53 = dma.vmem_to_hbm [thread:$0]  %s51, 256, %s2, [#allocation4]
    $region21: #{tpu_custom_call.1} parent=1 // pred_fallthru
      _
    // Predicated region
    $region22: #{tpu_custom_call.1} parent=1 // pred_check
      _
    $region23: #{tpu_custom_call.1} parent=1 // pred_check_branch
      %55 = sbr.rel (0) target = $region25
    $region24: #{tpu_custom_call.1} parent=1 // pred_region
      %56 = dma.done [#allocation4], 256
    $region25: #{tpu_custom_call.1} parent=1 // pred_fallthru
      _
    %57 = vsyncpa [#allocation3], 1
    %58 = vsyncpa [#allocation6], 1
    %59 = vsyncpa [#allocation4], 1

</llo_original>
